<compile_context>
chip_gen: v7x
topology: tpu7x:2x2x1
jax: 0.10.0
libtpu: 0.0.40
codegen_flags: <defaults>
</compile_context>

<pallas_src>
import functools

import jax
import jax.numpy as jnp
from jax.experimental import pallas as pl
from jax.experimental.pallas import tpu as pltpu

LANES = 128
SUBLANES = 8


def _wbce_kernel(x_ref, t_ref, out_ref, acc_ref, *, num_elems, steps,
                 num_full_blocks, needs_mask):
    """Accumulate per-chunk partial stats for weighted BCE-with-logits.

    x_ref, t_ref : (block_rows, 128) VMEM tiles (logits / targets, any dtype).
    out_ref      : (1, 4, 8, 128) f32 per-chunk partial-stats output block.
    acc_ref      : (4, 8, 128) f32 VMEM accumulator scratch:
                   [0] pos count, [1] neg count, [2] pos loss sum, [3] neg loss sum.
    """
    ci = pl.program_id(0)          # chunk axis ("parallel")
    si = pl.program_id(1)          # step axis within a chunk ("arbitrary")
    block_rows = x_ref.shape[0]
    block_elems = block_rows * LANES

    @pl.when(si == 0)
    def _init():
        acc_ref[...] = jnp.zeros_like(acc_ref)

    x = x_ref[...].astype(jnp.float32)
    t = t_ref[...].astype(jnp.float32)

    # Indicators computed once, reused for counts and weighted sums.
    # (Compare-based so non-binary / ignore labels get weight 0, like PyTorch.)
    pos_f = (t == 1.0).astype(jnp.float32)
    neg_f = (t == 0.0).astype(jnp.float32)

    # Numerically stable BCE with logits (same formula PyTorch uses):
    #   max(x, 0) - x*t + log(1 + exp(-|x|))
    bce = jnp.maximum(x, 0.0) - x * t + jnp.log1p(jnp.exp(-jnp.abs(x)))

    # Fold (block_rows, 128) -> (8, 128) using only cross-vreg elementwise adds.
    def fold(v):
        return jnp.sum(v.reshape(block_rows // SUBLANES, SUBLANES, LANES), axis=0)

    def accumulate(pf, nf, b):
        acc_ref[0, :, :] += fold(pf)
        acc_ref[1, :, :] += fold(nf)
        acc_ref[2, :, :] += fold(pf * b)
        acc_ref[3, :, :] += fold(nf * b)

    if not needs_mask:
        # Every block in the grid is fully valid: no mask work at all.
        accumulate(pos_f, neg_f, bce)
    else:
        blk = ci * steps + si

        @pl.when(blk < num_full_blocks)
        def _fast():
            # Interior block: fully valid, unmasked path.
            accumulate(pos_f, neg_f, bce)

        @pl.when(blk >= num_full_blocks)
        def _masked():
            # Tail / clamped-duplicate block: mask with a local compare
            # against the scalar remainder (rem <= 0 zeroes a duplicate).
            rem = num_elems - blk * block_elems
            row = jax.lax.broadcasted_iota(jnp.int32, (block_rows, LANES), 0)
            lane = jax.lax.broadcasted_iota(jnp.int32, (block_rows, LANES), 1)
            validb = (row * LANES + lane) < rem
            valid = validb.astype(jnp.float32)
            # where() on bce so garbage (possibly non-finite) padded lanes
            # cannot poison the sums via 0 * inf.
            accumulate(pos_f * valid, neg_f * valid,
                       jnp.where(validb, bce, 0.0))

    @pl.when(si == pl.num_programs(1) - 1)
    def _finalize():
        out_ref[0] = acc_ref[...]


def _default_block_rows():
    """Generation-tuned default tile height (rows of 128 lanes)."""
    kind = ""
    try:
        kind = jax.devices()[0].device_kind.lower()
    except Exception:
        pass
    if "v6" in kind or "trillium" in kind:
        return 8192        # 128 MiB VMEM, 1.3-1.4 TB/s: bigger tiles pay off.
    return 4096            # safe for v5e (16 MiB scoped default) and v7x (64 MiB VMEM).


@functools.partial(
    jax.jit, static_argnames=("coeff_bce", "block_rows", "num_chunks")
)
def boundary_loss(bd_pre, bd_gt, coeff_bce=20.0, block_rows=None, num_chunks=1):
    """BoundaryLoss.forward: coeff_bce * weighted_bce(bd_pre, bd_gt)."""
    n, c, h, w = bd_pre.shape
    num_elems = n * c * h * w
    assert num_elems < 2 ** 31, "int32 scalar indexing assumes < 2**31 elements"

    if c == 1:
        # NHWC flatten == natural flatten when c == 1: pure bitcast reshapes.
        logits = bd_pre.reshape(-1)
        target = bd_gt.reshape(-1)
    else:
        # Keep the f32 logits in their natural NCHW order (free reshape) and
        # permute the (usually narrower) target into matching order instead:
        # sum_j f(x_nhwc[j], t[j]) == sum_k f(x_nchw[k], t_perm[k]).
        logits = bd_pre.reshape(-1)
        target = bd_gt.reshape(n, h, w, c).transpose(0, 3, 1, 2).reshape(-1)

    # Pad only the ragged tail (rare for real boundary maps) so the flat
    # stream views as a lane-dense (rows, 128) slab with rows a multiple of 8.
    pad_unit = SUBLANES * LANES
    padded = -(-num_elems // pad_unit) * pad_unit
    if padded != num_elems:
        logits = jnp.pad(logits, (0, padded - num_elems))
        target = jnp.pad(target, (0, padded - num_elems))
    rows_total = padded // LANES

    logits2d = logits.reshape(rows_total, LANES)
    target2d = target.reshape(rows_total, LANES)

    if block_rows is None:
        block_rows = _default_block_rows()
    br = min(int(block_rows), rows_total)
    if br < rows_total:
        # 32-row multiples keep int8/bool target tiles legal (and f32/bf16 too).
        br = min(max(32, (br // 32) * 32), rows_total)

    total_blocks = -(-rows_total // br)
    nc = max(1, min(int(num_chunks), total_blocks))
    steps = -(-total_blocks // nc)

    if nc * steps == total_blocks:
        in_idx = lambda ci, si: (ci * steps + si, 0)
    else:
        # Ragged chunking: clamp the block index; the kernel's masked path
        # zeroes the duplicated block's contribution (rem <= 0).
        in_idx = lambda ci, si: (jnp.minimum(ci * steps + si, total_blocks - 1), 0)

    # A block is fully valid iff it lies entirely below num_elems.
    num_full_blocks = num_elems // (br * LANES)
    needs_mask = num_full_blocks < nc * steps

    kernel = functools.partial(
        _wbce_kernel,
        num_elems=num_elems,
        steps=steps,
        num_full_blocks=num_full_blocks,
        needs_mask=needs_mask,
    )

    # Raise the scoped-VMEM limit only when the double-buffered tiles need it.
    in_bytes = (jnp.dtype(logits2d.dtype).itemsize
                + jnp.dtype(target2d.dtype).itemsize)
    vmem_needed = 2 * br * LANES * in_bytes + (1 << 20)
    vmem_limit = None
    if vmem_needed > (12 << 20):
        vmem_limit = min(vmem_needed + (8 << 20), 48 << 20)

    stats = pl.pallas_call(
        kernel,
        out_shape=jax.ShapeDtypeStruct((nc, 4, SUBLANES, LANES), jnp.float32),
        grid_spec=pltpu.PrefetchScalarGridSpec(
            num_scalar_prefetch=0,
            grid=(nc, steps),
            in_specs=[
                pl.BlockSpec((br, LANES), in_idx),
                pl.BlockSpec((br, LANES), in_idx),
            ],
            out_specs=pl.BlockSpec(
                (1, 4, SUBLANES, LANES), lambda ci, si: (ci, 0, 0, 0)
            ),
            scratch_shapes=[pltpu.VMEM((4, SUBLANES, LANES), jnp.float32)],
        ),
        compiler_params=pltpu.CompilerParams(
            dimension_semantics=("parallel", "arbitrary"),
            vmem_limit_bytes=vmem_limit,
        ),
    )(logits2d, target2d)

    # Tiny final cross-lane reduction over (nc, 8, 128) partials in plain XLA.
    pos_num = jnp.sum(stats[:, 0])
    neg_num = jnp.sum(stats[:, 1])
    pos_loss = jnp.sum(stats[:, 2])
    neg_loss = jnp.sum(stats[:, 3])
    sum_num = pos_num + neg_num
    # sum_i weight_i*bce_i = (neg/sum)*sum_pos(bce) + (pos/sum)*sum_neg(bce);
    # reduction='mean' divides by the total element count.
    # (sum_num == 0 yields NaN exactly like the PyTorch reference.)
    weighted_sum = (neg_num / sum_num) * pos_loss + (pos_num / sum_num) * neg_loss
    mean_loss = weighted_sum / jnp.float32(num_elems)
    return jnp.float32(coeff_bce) * mean_loss


def _reference_loss(bd_pre, bd_gt, coeff_bce=20.0):
    """Pure-JAX mirror of the PyTorch code, for correctness checks."""
    logits = jnp.transpose(bd_pre, (0, 2, 3, 1)).reshape(-1).astype(jnp.float32)
    t = bd_gt.reshape(-1).astype(jnp.float32)
    pos = t == 1.0
    neg = t == 0.0
    pos_num = jnp.sum(pos.astype(jnp.float32))
    neg_num = jnp.sum(neg.astype(jnp.float32))
    sum_num = pos_num + neg_num
    weight = jnp.where(pos, neg_num / sum_num, jnp.where(neg, pos_num / sum_num, 0.0))
    bce = jnp.maximum(logits, 0.0) - logits * t + jnp.log1p(jnp.exp(-jnp.abs(logits)))
    return coeff_bce * jnp.mean(weight * bce)


if __name__ == "__main__":
    key = jax.random.PRNGKey(0)
    k1, k2, k3, k4, k5, k6 = jax.random.split(key, 6)

    # Case 1: typical single-channel boundary head (c==1 fast path, aligned size).
    n, c, h, w = 2, 1, 16, 16
    bd_pre = jax.random.normal(k1, (n, c, h, w), dtype=jnp.float32)
    bd_gt = jax.random.bernoulli(k2, p=0.3, shape=(n, h, w)).astype(jnp.float32)
    loss = jax.block_until_ready(boundary_loss(bd_pre, bd_gt, coeff_bce=20.0))
    ref = jax.block_until_ready(_reference_loss(bd_pre, bd_gt, coeff_bce=20.0))
    assert jnp.allclose(loss, ref, rtol=1e-5, atol=1e-5), (loss, ref)

    # Case 2: c > 1 (target-permute path) + ragged tail (masked tail block),
    # with a narrow int8 target as produced upstream.
    n, c, h, w = 2, 2, 12, 20
    bd_pre = jax.random.normal(k3, (n, c, h, w), dtype=jnp.float32)
    bd_gt = jax.random.bernoulli(k4, p=0.4, shape=(n, c, h, w)).astype(jnp.int8)
    loss = jax.block_until_ready(boundary_loss(bd_pre, bd_gt, coeff_bce=20.0))
    ref = jax.block_until_ready(_reference_loss(bd_pre, bd_gt, coeff_bce=20.0))
    assert jnp.allclose(loss, ref, rtol=1e-5, atol=1e-5), (loss, ref)

    # Case 3: forces multi-step accumulation, two chunks, and the clamped
    # (duplicate-block) masked path, with int8 targets and a tiny 32-row tile.
    n, c, h, w = 2, 1, 96, 64
    bd_pre = jax.random.normal(k5, (n, c, h, w), dtype=jnp.float32)
    bd_gt = jax.random.bernoulli(k6, p=0.25, shape=(n, h, w)).astype(jnp.int8)
    loss = jax.block_until_ready(
        boundary_loss(bd_pre, bd_gt, coeff_bce=20.0, block_rows=32, num_chunks=2)
    )
    ref = jax.block_until_ready(_reference_loss(bd_pre, bd_gt, coeff_bce=20.0))
    assert jnp.allclose(loss, ref, rtol=1e-5, atol=1e-5), (loss, ref)

    print("KERNEL_OK")
</pallas_src>

<mosaic_0001>
module attributes {stable_mosaic.version = 11 : i64} {
  func.func @_wbce_kernel(%arg0: i32, %arg1: i32, %arg2: memref<8x128xf32, #tpu.memory_space<vmem>>, %arg3: memref<8x128xf32, #tpu.memory_space<vmem>>, %arg4: memref<1x4x8x128xf32, #tpu.memory_space<vmem>>, %arg5: memref<4x8x128xf32, #tpu.memory_space<vmem>>) attributes {dimension_semantics = [#tpu.dimension_semantics<parallel>, #tpu.dimension_semantics<arbitrary>], iteration_bounds = array<i64: 1, 1>, scalar_prefetch = 0 : i64, scratch_operands = 1 : i64, tpu.core_type = #tpu.core_type<tc>, window_params = [{transform_indices = @transform_0, window_bounds = array<i64: 8, 128>}, {transform_indices = @transform_1, window_bounds = array<i64: 8, 128>}, {transform_indices = @transform_2, window_bounds = array<i64: 1, 4, 8, 128>}]} {
    %c0_i32 = arith.constant 0 : i32
    %0 = arith.cmpi eq, %arg1, %c0_i32 : i32
    %1 = arith.extui %0 : i1 to i32
    %c0_i32_0 = arith.constant 0 : i32
    %2 = arith.cmpi ne, %1, %c0_i32_0 : i32
    scf.if %2 {
      %cst_13 = arith.constant 0.000000e+00 : f32
      %34 = vector.broadcast %cst_13 : f32 to vector<4x8x128xf32>
      %c0_14 = arith.constant 0 : index
      %c0_15 = arith.constant 0 : index
      %c0_16 = arith.constant 0 : index
      %35 = vector.load %arg5[%c0_14, %c0_15, %c0_16] : memref<4x8x128xf32, #tpu.memory_space<vmem>>, vector<4x8x128xf32>
      tpu.vector_store %arg5[%c0_14, %c0_15, %c0_16], %34 {strides = array<i32>} : memref<4x8x128xf32, #tpu.memory_space<vmem>>, vector<4x8x128xf32>,
    } else {
    }
    %c0 = arith.constant 0 : index
    %c0_1 = arith.constant 0 : index
    %3 = vector.load %arg2[%c0, %c0_1] : memref<8x128xf32, #tpu.memory_space<vmem>>, vector<8x128xf32>
    %c0_2 = arith.constant 0 : index
    %c0_3 = arith.constant 0 : index
    %4 = vector.load %arg3[%c0_2, %c0_3] : memref<8x128xf32, #tpu.memory_space<vmem>>, vector<8x128xf32>
    %cst = arith.constant 1.000000e+00 : f32
    %5 = vector.broadcast %cst : f32 to vector<8x128xf32>
    %6 = arith.cmpf oeq, %4, %5 : vector<8x128xf32>
    %7 = arith.extui %6 : vector<8x128xi1> to vector<8x128xi32>
    %8 = arith.sitofp %7 : vector<8x128xi32> to vector<8x128xf32>
    %cst_4 = arith.constant 0.000000e+00 : f32
    %9 = vector.broadcast %cst_4 : f32 to vector<8x128xf32>
    %10 = arith.cmpf oeq, %4, %9 : vector<8x128xf32>
    %11 = arith.extui %10 : vector<8x128xi1> to vector<8x128xi32>
    %12 = arith.sitofp %11 : vector<8x128xi32> to vector<8x128xf32>
    %cst_5 = arith.constant 0.000000e+00 : f32
    %13 = vector.broadcast %cst_5 : f32 to vector<8x128xf32>
    %14 = arith.maximumf %3, %13 : vector<8x128xf32>
    %15 = arith.mulf %3, %4 : vector<8x128xf32>
    %16 = arith.subf %14, %15 : vector<8x128xf32>
    %17 = math.absf %3 : vector<8x128xf32>
    %cst_6 = arith.constant 0.000000e+00 : f32
    %18 = vector.broadcast %cst_6 : f32 to vector<8x128xf32>
    %19 = arith.subf %18, %17 : vector<8x128xf32>
    %20 = math.exp %19 : vector<8x128xf32>
    %21 = math.log1p %20 : vector<8x128xf32>
    %22 = arith.addf %16, %21 : vector<8x128xf32>
    %c1_i32 = arith.constant 1 : i32
    %23 = arith.muli %arg0, %c1_i32 : i32
    %24 = arith.addi %23, %arg1 : i32
    %c0_i32_7 = arith.constant 0 : i32
    %25 = arith.cmpi slt, %24, %c0_i32_7 : i32
    %26 = arith.extui %25 : i1 to i32
    %c0_i32_8 = arith.constant 0 : i32
    %27 = arith.cmpi ne, %26, %c0_i32_8 : i32
    scf.if %27 {
      %c0_13 = arith.constant 0 : index
      %c0_14 = arith.constant 0 : index
      %c0_15 = arith.constant 0 : index
      %34 = vector.load %arg5[%c0_13, %c0_14, %c0_15] : memref<4x8x128xf32, #tpu.memory_space<vmem>>, vector<1x8x128xf32>
      %35 = vector.shape_cast %34 : vector<1x8x128xf32> to vector<8x128xf32>
      %36 = vector.shape_cast %8 : vector<8x128xf32> to vector<1x8x128xf32>
      %cst_16 = arith.constant dense<0.000000e+00> : vector<8x128xf32>
      %37 = vector.multi_reduction <add>, %36, %cst_16 [0] : vector<1x8x128xf32> to vector<8x128xf32>
      %38 = arith.addf %35, %37 : vector<8x128xf32>
      %c0_17 = arith.constant 0 : index
      %c0_18 = arith.constant 0 : index
      %c0_19 = arith.constant 0 : index
      %39 = vector.load %arg5[%c0_17, %c0_18, %c0_19] : memref<4x8x128xf32, #tpu.memory_space<vmem>>, vector<1x8x128xf32>
      %40 = vector.shape_cast %39 : vector<1x8x128xf32> to vector<8x128xf32>
      %41 = vector.shape_cast %38 : vector<8x128xf32> to vector<1x8x128xf32>
      tpu.vector_store %arg5[%c0_17, %c0_18, %c0_19], %41 {strides = array<i32>} : memref<4x8x128xf32, #tpu.memory_space<vmem>>, vector<1x8x128xf32>,
      %c1 = arith.constant 1 : index
      %c0_20 = arith.constant 0 : index
      %c0_21 = arith.constant 0 : index
      %42 = vector.load %arg5[%c1, %c0_20, %c0_21] : memref<4x8x128xf32, #tpu.memory_space<vmem>>, vector<1x8x128xf32>
      %43 = vector.shape_cast %42 : vector<1x8x128xf32> to vector<8x128xf32>
      %44 = vector.shape_cast %12 : vector<8x128xf32> to vector<1x8x128xf32>
      %cst_22 = arith.constant dense<0.000000e+00> : vector<8x128xf32>
      %45 = vector.multi_reduction <add>, %44, %cst_22 [0] : vector<1x8x128xf32> to vector<8x128xf32>
      %46 = arith.addf %43, %45 : vector<8x128xf32>
      %c1_23 = arith.constant 1 : index
      %c0_24 = arith.constant 0 : index
      %c0_25 = arith.constant 0 : index
      %47 = vector.load %arg5[%c1_23, %c0_24, %c0_25] : memref<4x8x128xf32, #tpu.memory_space<vmem>>, vector<1x8x128xf32>
      %48 = vector.shape_cast %47 : vector<1x8x128xf32> to vector<8x128xf32>
      %49 = vector.shape_cast %46 : vector<8x128xf32> to vector<1x8x128xf32>
      tpu.vector_store %arg5[%c1_23, %c0_24, %c0_25], %49 {strides = array<i32>} : memref<4x8x128xf32, #tpu.memory_space<vmem>>, vector<1x8x128xf32>,
      %c2 = arith.constant 2 : index
      %c0_26 = arith.constant 0 : index
      %c0_27 = arith.constant 0 : index
      %50 = vector.load %arg5[%c2, %c0_26, %c0_27] : memref<4x8x128xf32, #tpu.memory_space<vmem>>, vector<1x8x128xf32>
      %51 = vector.shape_cast %50 : vector<1x8x128xf32> to vector<8x128xf32>
      %52 = arith.mulf %8, %22 : vector<8x128xf32>
      %53 = vector.shape_cast %52 : vector<8x128xf32> to vector<1x8x128xf32>
      %cst_28 = arith.constant dense<0.000000e+00> : vector<8x128xf32>
      %54 = vector.multi_reduction <add>, %53, %cst_28 [0] : vector<1x8x128xf32> to vector<8x128xf32>
      %55 = arith.addf %51, %54 : vector<8x128xf32>
      %c2_29 = arith.constant 2 : index
      %c0_30 = arith.constant 0 : index
      %c0_31 = arith.constant 0 : index
      %56 = vector.load %arg5[%c2_29, %c0_30, %c0_31] : memref<4x8x128xf32, #tpu.memory_space<vmem>>, vector<1x8x128xf32>
      %57 = vector.shape_cast %56 : vector<1x8x128xf32> to vector<8x128xf32>
      %58 = vector.shape_cast %55 : vector<8x128xf32> to vector<1x8x128xf32>
      tpu.vector_store %arg5[%c2_29, %c0_30, %c0_31], %58 {strides = array<i32>} : memref<4x8x128xf32, #tpu.memory_space<vmem>>, vector<1x8x128xf32>,
      %c3 = arith.constant 3 : index
      %c0_32 = arith.constant 0 : index
      %c0_33 = arith.constant 0 : index
      %59 = vector.load %arg5[%c3, %c0_32, %c0_33] : memref<4x8x128xf32, #tpu.memory_space<vmem>>, vector<1x8x128xf32>
      %60 = vector.shape_cast %59 : vector<1x8x128xf32> to vector<8x128xf32>
      %61 = arith.mulf %12, %22 : vector<8x128xf32>
      %62 = vector.shape_cast %61 : vector<8x128xf32> to vector<1x8x128xf32>
      %cst_34 = arith.constant dense<0.000000e+00> : vector<8x128xf32>
      %63 = vector.multi_reduction <add>, %62, %cst_34 [0] : vector<1x8x128xf32> to vector<8x128xf32>
      %64 = arith.addf %60, %63 : vector<8x128xf32>
      %c3_35 = arith.constant 3 : index
      %c0_36 = arith.constant 0 : index
      %c0_37 = arith.constant 0 : index
      %65 = vector.load %arg5[%c3_35, %c0_36, %c0_37] : memref<4x8x128xf32, #tpu.memory_space<vmem>>, vector<1x8x128xf32>
      %66 = vector.shape_cast %65 : vector<1x8x128xf32> to vector<8x128xf32>
      %67 = vector.shape_cast %64 : vector<8x128xf32> to vector<1x8x128xf32>
      tpu.vector_store %arg5[%c3_35, %c0_36, %c0_37], %67 {strides = array<i32>} : memref<4x8x128xf32, #tpu.memory_space<vmem>>, vector<1x8x128xf32>,
    } else {
    }
    %c0_i32_9 = arith.constant 0 : i32
    %28 = arith.cmpi sge, %24, %c0_i32_9 : i32
    %29 = arith.extui %28 : i1 to i32
    %c0_i32_10 = arith.constant 0 : i32
    %30 = arith.cmpi ne, %29, %c0_i32_10 : i32
    scf.if %30 {
      %c1024_i32 = arith.constant 1024 : i32
      %34 = arith.muli %24, %c1024_i32 : i32
      %c512_i32 = arith.constant 512 : i32
      %35 = arith.subi %c512_i32, %34 : i32
      %36 = tpu.iota {dimensions = array<i32: 0>} : vector<8x128xi32>
      %37 = tpu.iota {dimensions = array<i32: 1>} : vector<8x128xi32>
      %c128_i32 = arith.constant 128 : i32
      %38 = vector.broadcast %c128_i32 : i32 to vector<8x128xi32>
      %39 = arith.muli %36, %38 : vector<8x128xi32>
      %40 = arith.addi %39, %37 : vector<8x128xi32>
      %41 = vector.broadcast %35 : i32 to vector<8x128xi32>
      %42 = arith.cmpi slt, %40, %41 : vector<8x128xi32>
      %43 = arith.extui %42 : vector<8x128xi1> to vector<8x128xi32>
      %44 = arith.sitofp %43 : vector<8x128xi32> to vector<8x128xf32>
      %45 = arith.mulf %8, %44 : vector<8x128xf32>
      %46 = arith.mulf %12, %44 : vector<8x128xf32>
      %cst_13 = arith.constant 0.000000e+00 : f32
      %47 = vector.broadcast %cst_13 : f32 to vector<8x128xf32>
      %48 = arith.select %42, %22, %47 : vector<8x128xi1>, vector<8x128xf32>
      %c0_14 = arith.constant 0 : index
      %c0_15 = arith.constant 0 : index
      %c0_16 = arith.constant 0 : index
      %49 = vector.load %arg5[%c0_14, %c0_15, %c0_16] : memref<4x8x128xf32, #tpu.memory_space<vmem>>, vector<1x8x128xf32>
      %50 = vector.shape_cast %49 : vector<1x8x128xf32> to vector<8x128xf32>
      %51 = vector.shape_cast %45 : vector<8x128xf32> to vector<1x8x128xf32>
      %cst_17 = arith.constant dense<0.000000e+00> : vector<8x128xf32>
      %52 = vector.multi_reduction <add>, %51, %cst_17 [0] : vector<1x8x128xf32> to vector<8x128xf32>
      %53 = arith.addf %50, %52 : vector<8x128xf32>
      %c0_18 = arith.constant 0 : index
      %c0_19 = arith.constant 0 : index
      %c0_20 = arith.constant 0 : index
      %54 = vector.load %arg5[%c0_18, %c0_19, %c0_20] : memref<4x8x128xf32, #tpu.memory_space<vmem>>, vector<1x8x128xf32>
      %55 = vector.shape_cast %54 : vector<1x8x128xf32> to vector<8x128xf32>
      %56 = vector.shape_cast %53 : vector<8x128xf32> to vector<1x8x128xf32>
      tpu.vector_store %arg5[%c0_18, %c0_19, %c0_20], %56 {strides = array<i32>} : memref<4x8x128xf32, #tpu.memory_space<vmem>>, vector<1x8x128xf32>,
      %c1 = arith.constant 1 : index
      %c0_21 = arith.constant 0 : index
      %c0_22 = arith.constant 0 : index
      %57 = vector.load %arg5[%c1, %c0_21, %c0_22] : memref<4x8x128xf32, #tpu.memory_space<vmem>>, vector<1x8x128xf32>
      %58 = vector.shape_cast %57 : vector<1x8x128xf32> to vector<8x128xf32>
      %59 = vector.shape_cast %46 : vector<8x128xf32> to vector<1x8x128xf32>
      %cst_23 = arith.constant dense<0.000000e+00> : vector<8x128xf32>
      %60 = vector.multi_reduction <add>, %59, %cst_23 [0] : vector<1x8x128xf32> to vector<8x128xf32>
      %61 = arith.addf %58, %60 : vector<8x128xf32>
      %c1_24 = arith.constant 1 : index
      %c0_25 = arith.constant 0 : index
      %c0_26 = arith.constant 0 : index
      %62 = vector.load %arg5[%c1_24, %c0_25, %c0_26] : memref<4x8x128xf32, #tpu.memory_space<vmem>>, vector<1x8x128xf32>
      %63 = vector.shape_cast %62 : vector<1x8x128xf32> to vector<8x128xf32>
      %64 = vector.shape_cast %61 : vector<8x128xf32> to vector<1x8x128xf32>
      tpu.vector_store %arg5[%c1_24, %c0_25, %c0_26], %64 {strides = array<i32>} : memref<4x8x128xf32, #tpu.memory_space<vmem>>, vector<1x8x128xf32>,
      %c2 = arith.constant 2 : index
      %c0_27 = arith.constant 0 : index
      %c0_28 = arith.constant 0 : index
      %65 = vector.load %arg5[%c2, %c0_27, %c0_28] : memref<4x8x128xf32, #tpu.memory_space<vmem>>, vector<1x8x128xf32>
      %66 = vector.shape_cast %65 : vector<1x8x128xf32> to vector<8x128xf32>
      %67 = arith.mulf %45, %48 : vector<8x128xf32>
      %68 = vector.shape_cast %67 : vector<8x128xf32> to vector<1x8x128xf32>
      %cst_29 = arith.constant dense<0.000000e+00> : vector<8x128xf32>
      %69 = vector.multi_reduction <add>, %68, %cst_29 [0] : vector<1x8x128xf32> to vector<8x128xf32>
      %70 = arith.addf %66, %69 : vector<8x128xf32>
      %c2_30 = arith.constant 2 : index
      %c0_31 = arith.constant 0 : index
      %c0_32 = arith.constant 0 : index
      %71 = vector.load %arg5[%c2_30, %c0_31, %c0_32] : memref<4x8x128xf32, #tpu.memory_space<vmem>>, vector<1x8x128xf32>
      %72 = vector.shape_cast %71 : vector<1x8x128xf32> to vector<8x128xf32>
      %73 = vector.shape_cast %70 : vector<8x128xf32> to vector<1x8x128xf32>
      tpu.vector_store %arg5[%c2_30, %c0_31, %c0_32], %73 {strides = array<i32>} : memref<4x8x128xf32, #tpu.memory_space<vmem>>, vector<1x8x128xf32>,
      %c3 = arith.constant 3 : index
      %c0_33 = arith.constant 0 : index
      %c0_34 = arith.constant 0 : index
      %74 = vector.load %arg5[%c3, %c0_33, %c0_34] : memref<4x8x128xf32, #tpu.memory_space<vmem>>, vector<1x8x128xf32>
      %75 = vector.shape_cast %74 : vector<1x8x128xf32> to vector<8x128xf32>
      %76 = arith.mulf %46, %48 : vector<8x128xf32>
      %77 = vector.shape_cast %76 : vector<8x128xf32> to vector<1x8x128xf32>
      %cst_35 = arith.constant dense<0.000000e+00> : vector<8x128xf32>
      %78 = vector.multi_reduction <add>, %77, %cst_35 [0] : vector<1x8x128xf32> to vector<8x128xf32>
      %79 = arith.addf %75, %78 : vector<8x128xf32>
      %c3_36 = arith.constant 3 : index
      %c0_37 = arith.constant 0 : index
      %c0_38 = arith.constant 0 : index
      %80 = vector.load %arg5[%c3_36, %c0_37, %c0_38] : memref<4x8x128xf32, #tpu.memory_space<vmem>>, vector<1x8x128xf32>
      %81 = vector.shape_cast %80 : vector<1x8x128xf32> to vector<8x128xf32>
      %82 = vector.shape_cast %79 : vector<8x128xf32> to vector<1x8x128xf32>
      tpu.vector_store %arg5[%c3_36, %c0_37, %c0_38], %82 {strides = array<i32>} : memref<4x8x128xf32, #tpu.memory_space<vmem>>, vector<1x8x128xf32>,
    } else {
    }
    %c0_i32_11 = arith.constant 0 : i32
    %31 = arith.cmpi eq, %arg1, %c0_i32_11 : i32
    %32 = arith.extui %31 : i1 to i32
    %c0_i32_12 = arith.constant 0 : i32
    %33 = arith.cmpi ne, %32, %c0_i32_12 : i32
    scf.if %33 {
      %c0_13 = arith.constant 0 : index
      %c0_14 = arith.constant 0 : index
      %c0_15 = arith.constant 0 : index
      %34 = vector.load %arg5[%c0_13, %c0_14, %c0_15] : memref<4x8x128xf32, #tpu.memory_space<vmem>>, vector<4x8x128xf32>
      %c0_16 = arith.constant 0 : index
      %c0_17 = arith.constant 0 : index
      %c0_18 = arith.constant 0 : index
      %c0_19 = arith.constant 0 : index
      %35 = vector.load %arg4[%c0_16, %c0_17, %c0_18, %c0_19] : memref<1x4x8x128xf32, #tpu.memory_space<vmem>>, vector<1x4x8x128xf32>
      %36 = vector.shape_cast %35 : vector<1x4x8x128xf32> to vector<4x8x128xf32>
      %37 = vector.shape_cast %34 : vector<4x8x128xf32> to vector<1x4x8x128xf32>
      tpu.vector_store %arg4[%c0_16, %c0_17, %c0_18, %c0_19], %37 {strides = array<i32>} : memref<1x4x8x128xf32, #tpu.memory_space<vmem>>, vector<1x4x8x128xf32>,
    } else {
    }
    return
  }
  func.func @transform_0(%arg0: i32, %arg1: i32) -> (i32, i32) {
    %c1_i32 = arith.constant 1 : i32
    %0 = arith.muli %arg0, %c1_i32 : i32
    %1 = arith.addi %0, %arg1 : i32
    %c0_i32 = arith.constant 0 : i32
    %c0_i32_0 = arith.constant 0 : i32
    return %1, %c0_i32 : i32, i32
  }
  func.func @transform_1(%arg0: i32, %arg1: i32) -> (i32, i32) {
    %c1_i32 = arith.constant 1 : i32
    %0 = arith.muli %arg0, %c1_i32 : i32
    %1 = arith.addi %0, %arg1 : i32
    %c0_i32 = arith.constant 0 : i32
    %c0_i32_0 = arith.constant 0 : i32
    return %1, %c0_i32 : i32, i32
  }
  func.func @transform_2(%arg0: i32, %arg1: i32) -> (i32, i32, i32, i32) {
    %c0_i32 = arith.constant 0 : i32
    %c0_i32_0 = arith.constant 0 : i32
    %c0_i32_1 = arith.constant 0 : i32
    %c0_i32_2 = arith.constant 0 : i32
    return %arg0, %c0_i32, %c0_i32_0, %c0_i32_1 : i32, i32, i32, i32
  }
}

</mosaic_0001>

<llo_original>
// kernel: boundary_loss.1
$region0: #{boundary_loss.1}
  #allocation0 [shape = 'u32[]', space=smem, size = 0x4, offset = 0x4, fixed_abs, tag = 'smem constant byte address 0x4 - core index']
  #allocation1 [shape = 'u32[144,128]{1,0:T(1,128)}', space=vmem, size = 0x12000, scoped, tag = 'internal scratch']
  #allocation2 [shape = 'f32[4,8,128]{2,1,0:T(8,128)}', space=vmem, size = 0x4000, scoped, tag = 'scratch operand']
  %s0 = inlined_call_operand.vmem [shape: f32[8,128], index: 0, kind: input, shape index: {}]
  %s1 = inlined_call_operand.vmem [shape: f32[8,128], index: 1, kind: input, shape index: {}]
  %s2 = inlined_call_operand.vmem [shape: f32[1,4,8,128], index: 2, kind: output, shape index: {}]
  %s3 = sld [smem:[#allocation0]]
  $region34: #{boundary_loss.1} parent=0
    _
  %s5 = ssub.s32 1, %s3
  %s6 = scalar_select 0, %s5, %s3
  // Predicated region
  $region2: #{boundary_loss.1} parent=0 // pred_check
    _
  $region3: #{boundary_loss.1} parent=0 // pred_check_branch
    %8 = sbr.rel (0) target = $region5
  $region4: #{boundary_loss.1} parent=0 // pred_region
    %s9 = sadd.s32 0, 0
    %p10 = scmp.lt.s32.totalorder %s9, 0
    %s11 = scalar_select %p10, %s9, 0
    %s12 = smul.addr %s11, 8
    %s13 = scalar_lea.vmem %s0, %s12
    %s14 = sadd.s32 0, 0
  $region5: #{boundary_loss.1} parent=0 // pred_fallthru
    _
  // Predicated region
  $region6: #{boundary_loss.1} parent=0 // pred_check
    _
  $region7: #{boundary_loss.1} parent=0 // pred_check_branch
    %16 = sbr.rel (0) target = $region9
  $region8: #{boundary_loss.1} parent=0 // pred_region
    %s17 = sadd.s32 0, 0
    %p18 = scmp.lt.s32.totalorder %s17, 0
    %s19 = scalar_select %p18, %s17, 0
    %s20 = smul.addr %s19, 8
    %s21 = scalar_lea.vmem %s1, %s20
    %s22 = sadd.s32 0, 0
  $region9: #{boundary_loss.1} parent=0 // pred_fallthru
    _
  %s23 = sadd.s32 0, 0
  %p24 = scmp.lt.s32.totalorder %s23, 0
  %s25 = scalar_select %p24, %s23, 0
  %s26 = smul.addr %s25, 8
  %s27 = scalar_lea.vmem %s0, %s26
  %s28 = sadd.s32 0, 0
  %p29 = scmp.lt.s32.totalorder %s28, 0
  %s30 = scalar_select %p29, %s28, 0
  %s31 = smul.addr %s30, 8
  %s32 = scalar_lea.vmem %s1, %s31
  %s33 = sadd.s32 0, 0
  %p34 = scmp.lt.s32.totalorder %s33, 0
  %s35 = scalar_select %p34, %s33, 0
  %s36 = smul.addr %s35, 8
  %s37 = scalar_lea.vmem %s0, %s36
  %s38 = sadd.s32 0, 0
  %s39 = sadd.s32 0, 0
  %p40 = scmp.lt.s32.totalorder %s39, 0
  %s41 = scalar_select %p40, %s39, 0
  %s42 = smul.addr %s41, 8
  %s43 = scalar_lea.vmem %s1, %s42
  %s44 = sadd.s32 0, 0
  %p45 = scmp.eq.s32.totalorder 0, 0
  // Predicated region
  $region10: #{boundary_loss.1} parent=0 // pred_check
    %p46 = pneg %p45
  $region11: #{boundary_loss.1} parent=0 // pred_check_branch
    %48 = sbr.rel (%p46) target = $region13
  $region12: #{boundary_loss.1} parent=0 // pred_region
    %49 = vst [vmem:[#allocation2] sm:$0xff] 0.0
    %50 = vst [vmem:[#allocation2 + $0x8] sm:$0xff] 0.0
    %51 = vst [vmem:[#allocation2 + $0x10] sm:$0xff] 0.0
    %52 = vst [vmem:[#allocation2 + $0x18] sm:$0xff] 0.0
  $region13: #{boundary_loss.1} parent=0 // pred_fallthru
    _
  %v53 = vld [vmem:[%s37] sm:$0xff]
  %v54 = vld [vmem:[%s43] sm:$0xff]
  %vm55 = vcmp.eq.f32.partialorder %v54, 1.0
  %v56 = vsel %vm55, 1, 0
  %v57 = vcvt.s32.f32 %v56
  %vm58 = vcmp.eq.f32.partialorder %v54, 0.0
  %v59 = vsel %vm58, 1, 0
  %v60 = vcvt.s32.f32 %v59
  %v61 = vmax.f32 %v53, 0.0
  %v62 = vmul.f32 %v53, %v54
  %v63 = vsub.f32 %v61, %v62
  %v64 = vand.u32 2147483647, %v53
  %v65 = vsub.f32 0.0, %v64
  %v66 = vmul.f32 %v65, 1.442695
  %v67 = vpow.pop %v66
  %v68 = vadd.f32 %v67, 1.0
  %v69 = vlog2.pop %v68
  %v70 = vmul.f32 %v69, 0.6931472
  %v71 = vmul.f32 -0.5, %v67
  %v72 = vadd.f32 %v71, 1.0
  %v73 = vmul.f32 %v72, %v67
  %v74 = vand.u32 2147483647, %v67
  %vm75 = vcmp.lt.f32.partialorder %v74, 0.0004427343
  %v76 = vsel %vm75, %v73, %v70
  %v77 = vadd.f32 %v63, %v76
  %s78 = sadd.s32 0, 0
  %p79 = scmp.lt.s32.totalorder %s78, 0
  // Predicated region
  $region14: #{boundary_loss.1} parent=0 // pred_check
    %p80 = pneg %p79
  $region15: #{boundary_loss.1} parent=0 // pred_check_branch
    %82 = sbr.rel (%p80) target = $region17
  $region16: #{boundary_loss.1} parent=0 // pred_region
    %v83 = vld [vmem:[#allocation2] sm:$0xff]
    %v84 = vadd.f32 %v57, 0.0
    %v85 = vadd.f32 %v83, %v84
    %86 = vst [vmem:[#allocation2] sm:$0xff] %v85
    %s87 = scalar_lea.vmem [#allocation2], 8
    %v88 = vld [vmem:[%s87] sm:$0xff]
    %v89 = vadd.f32 %v60, 0.0
    %v90 = vadd.f32 %v88, %v89
    %91 = vst [vmem:[%s87] sm:$0xff] %v90
    %s92 = scalar_lea.vmem [#allocation2], 16
    %v93 = vld [vmem:[%s92] sm:$0xff]
    %v94 = vmul.f32 %v57, %v77
    %v95 = vadd.f32 %v94, 0.0
    %v96 = vadd.f32 %v93, %v95
    %97 = vst [vmem:[%s92] sm:$0xff] %v96
    %s98 = scalar_lea.vmem [#allocation2], 24
    %v99 = vld [vmem:[%s98] sm:$0xff]
    %v100 = vmul.f32 %v60, %v77
    %v101 = vadd.f32 %v100, 0.0
    %v102 = vadd.f32 %v99, %v101
    %103 = vst [vmem:[%s98] sm:$0xff] %v102
  $region17: #{boundary_loss.1} parent=0 // pred_fallthru
    _
  %p104 = scmp.ge.s32.totalorder %s78, 0
  // Predicated region
  $region18: #{boundary_loss.1} parent=0 // pred_check
    %p105 = pneg %p104
  $region19: #{boundary_loss.1} parent=0 // pred_check_branch
    %107 = sbr.rel (%p105) target = $region21
  $region20: #{boundary_loss.1} parent=0 // pred_region
    %s108 = smul.u32 %s78, 1024
    %s109 = ssub.s32 512, %s108
    %v110 = vlaneseq
    %v111 = vshrl.u32 %v110, 7
    %v112 = vlaneseq
    %v113 = vand.u32 %v112, 127
    %v114 = vmul.u32 %v111, 128
    %v115 = vadd.s32 %v114, %v113
    %v116 = vstv %s109
    %vm117 = vcmp.lt.s32.totalorder %v115, %v116
    %v118 = vsel %vm117, 1, 0
    %v119 = vcvt.s32.f32 %v118
    %v120 = vmul.f32 %v57, %v119
    %v121 = vmul.f32 %v60, %v119
    %v122 = vsel %vm117, %v77, 0.0
    %v123 = vld [vmem:[#allocation2] sm:$0xff]
    %v124 = vadd.f32 %v120, 0.0
    %v125 = vadd.f32 %v123, %v124
    %126 = vst [vmem:[#allocation2] sm:$0xff] %v125
    %s127 = scalar_lea.vmem [#allocation2], 8
    %v128 = vld [vmem:[%s127] sm:$0xff]
    %v129 = vadd.f32 %v121, 0.0
    %v130 = vadd.f32 %v128, %v129
    %131 = vst [vmem:[%s127] sm:$0xff] %v130
    %s132 = scalar_lea.vmem [#allocation2], 16
    %v133 = vld [vmem:[%s132] sm:$0xff]
    %v134 = vmul.f32 %v120, %v122
    %v135 = vadd.f32 %v134, 0.0
    %v136 = vadd.f32 %v133, %v135
    %137 = vst [vmem:[%s132] sm:$0xff] %v136
    %s138 = scalar_lea.vmem [#allocation2], 24
    %v139 = vld [vmem:[%s138] sm:$0xff]
    %v140 = vmul.f32 %v121, %v122
    %v141 = vadd.f32 %v140, 0.0
    %v142 = vadd.f32 %v139, %v141
    %143 = vst [vmem:[%s138] sm:$0xff] %v142
  $region21: #{boundary_loss.1} parent=0 // pred_fallthru
    _
  // Predicated region
  $region22: #{boundary_loss.1} parent=0 // pred_check
    %p144 = pneg %p45
  $region23: #{boundary_loss.1} parent=0 // pred_check_branch
    %146 = sbr.rel (%p144) target = $region25
  $region24: #{boundary_loss.1} parent=0 // pred_region
    %v147 = vld [vmem:[#allocation2] sm:$0xff]
    %v148 = vld [vmem:[#allocation2 + $0x8] sm:$0xff]
    %v149 = vld [vmem:[#allocation2 + $0x10] sm:$0xff]
    %v150 = vld [vmem:[#allocation2 + $0x18] sm:$0xff]
    %151 = vst [vmem:[%s2] sm:$0xff] %v147
    %152 = vst [vmem:[%s2 + $0x8] sm:$0xff] %v148
    %153 = vst [vmem:[%s2 + $0x10] sm:$0xff] %v149
    %154 = vst [vmem:[%s2 + $0x18] sm:$0xff] %v150
  $region25: #{boundary_loss.1} parent=0 // pred_fallthru
    _
  // Predicated region
  $region26: #{boundary_loss.1} parent=0 // pred_check
    _
  $region27: #{boundary_loss.1} parent=0 // pred_check_branch
    %156 = sbr.rel (0) target = $region29
  $region28: #{boundary_loss.1} parent=0 // pred_region
    _
  $region29: #{boundary_loss.1} parent=0 // pred_fallthru
    _
  // Predicated region
  $region30: #{boundary_loss.1} parent=0 // pred_check
    _
  $region31: #{boundary_loss.1} parent=0 // pred_check_branch
    %158 = sbr.rel (0) target = $region33
  $region32: #{boundary_loss.1} parent=0 // pred_region
    _
  $region33: #{boundary_loss.1} parent=0 // pred_fallthru
    _

</llo_original>
